<compile_context>
chip_gen: v7x
topology: tpu7x:2x2x1
jax: 0.10.0
libtpu: 0.0.40
codegen_flags: <defaults>
</compile_context>

<pallas_src>
import functools
import math

import jax
import jax.numpy as jnp
from jax.experimental import pallas as pl
from jax.experimental.pallas import tpu as pltpu

_MAX_TM = 512
_MAX_TN = 512
_MAX_TK = 1024   # K collapsed into a single grid step up to this size
_K_STEP = 512    # K tile when K > _MAX_TK (weight is pre-padded to a multiple)


def _round_up(x, m):
    return ((x + m - 1) // m) * m


# ---------------------------------------------------------------------------
# Kernel: one (tm, tn) f32 output tile; K is the innermost (reduction) axis.
# The output block index (i, j) is constant across k, so o_ref is resident in
# VMEM across the whole K sweep and serves directly as the accumulator.
# ---------------------------------------------------------------------------
def _linear_kernel(x_ref, wt_ref, b_ref, o_ref):
    @pl.when(pl.program_id(2) == 0)
    def _():
        # Initialise the resident output tile with the bias -> no finalize step.
        o_ref[...] = jnp.broadcast_to(b_ref[...], o_ref.shape)

    # bf16 x bf16 -> f32 accumulation on the MXU.
    o_ref[...] += jnp.dot(
        x_ref[...], wt_ref[...], preferred_element_type=jnp.float32
    )


# ---------------------------------------------------------------------------
# Tile selection / VMEM budgeting
# ---------------------------------------------------------------------------
def _pick_tiles(m, k_pad, n_pad):
    """tm: multiple of 16 (bf16 sublane packing); tn: multiple of 128 dividing
    n_pad (lane-dense, unmasked stores); tk: full K (<=1024) or the 512-wide
    step the weight was pre-padded to."""
    tm = min(_MAX_TM, _round_up(m, 16))

    tn = 128
    for cand in (_MAX_TN, 256):
        if n_pad % cand == 0:
            tn = cand
            break

    tk = k_pad if k_pad <= _MAX_TK else _K_STEP

    # v7x has 2 TensorCores: make sure the parallel (M, N) grid has >= 2 tiles
    # so dimension_semantics=("parallel","parallel",...) can shard across them.
    m_pad = _round_up(m, tm)
    if (m_pad // tm) * (n_pad // tn) < 2:
        if tn >= 256:
            tn //= 2
        elif tm >= 32 and tm % 32 == 0:
            tm //= 2
    return tm, tk, tn


def _vmem_limit_bytes():
    # Device-aware scoped-VMEM budget: generous, but capped well below the
    # 64 MiB physical VMEM of a v7x TensorCore (128 MiB on v5e/v6e).
    cap = 64 * 1024 * 1024
    try:
        cap = int(pltpu.get_tpu_info().vmem_capacity_bytes)
    except Exception:
        pass
    return min(cap * 3 // 4, 96 * 1024 * 1024)


# ---------------------------------------------------------------------------
# Forward wrapper
# ---------------------------------------------------------------------------
@functools.partial(jax.jit, static_argnames=("n_out",))
def temporal_forward_pallas(x, wt_p, b_p, *, n_out):
    """x: (..., K_in); wt_p: (K_pad, N_pad) bf16 pre-transposed/padded weight;
    b_p: (1, N_pad) f32 padded bias; n_out: true output features (static)."""
    k_pad, n_pad = wt_p.shape
    assert n_pad % 128 == 0, "wt_p/b_p must come from prepare_temporal_params"
    lead = x.shape[:-1]
    k_in = x.shape[-1]
    m = math.prod(lead) if lead else 1

    tm, tk, tn = _pick_tiles(m, k_pad, n_pad)
    assert k_pad % tk == 0 and n_pad % tn == 0
    m_pad = _round_up(m, tm)

    # bf16 operands for the MXU (f32 accumulation happens inside the kernel).
    x2d = x.reshape(m, k_in).astype(jnp.bfloat16)
    # Pad only when not already tile-aligned (K zeros contribute nothing).
    if m_pad != m or k_pad != k_in:
        x2d = jnp.pad(x2d, ((0, m_pad - m), (0, k_pad - k_in)))

    grid = (m_pad // tm, n_pad // tn, k_pad // tk)

    cost = pl.CostEstimate(
        flops=2 * m * k_in * n_out,
        transcendentals=0,
        bytes_accessed=(x2d.size * 2 + wt_p.size * 2 + b_p.size * 4
                        + m_pad * n_pad * 4),
    )

    out2d = pl.pallas_call(
        _linear_kernel,
        out_shape=jax.ShapeDtypeStruct((m_pad, n_pad), jnp.float32),
        grid_spec=pltpu.PrefetchScalarGridSpec(
            num_scalar_prefetch=0,
            grid=grid,
            in_specs=[
                pl.BlockSpec((tm, tk), lambda i, j, k: (i, k)),
                pl.BlockSpec((tk, tn), lambda i, j, k: (k, j)),
                pl.BlockSpec((1, tn), lambda i, j, k: (0, j)),
            ],
            out_specs=pl.BlockSpec((tm, tn), lambda i, j, k: (i, j)),
        ),
        compiler_params=pltpu.CompilerParams(
            dimension_semantics=("parallel", "parallel", "arbitrary"),
            vmem_limit_bytes=_vmem_limit_bytes(),
        ),
        cost_estimate=cost,
    )(x2d, wt_p, b_p)

    out = out2d[:m, :n_out].reshape(*lead, n_out)
    if x.dtype != jnp.float32:
        out = out.astype(x.dtype)
    return out


# ---------------------------------------------------------------------------
# Parameter init (mirrors nn.Linear default uniform(-1/sqrt(in), 1/sqrt(in)))
# and one-time conversion to the kernel layout.
# ---------------------------------------------------------------------------
def init_temporal_params(key, input_size, out_size, dtype=jnp.float32):
    kw, kb = jax.random.split(key)
    bound = 1.0 / (input_size ** 0.5)
    weight = jax.random.uniform(
        kw, (out_size, input_size), dtype=dtype, minval=-bound, maxval=bound)
    bias = jax.random.uniform(
        kb, (out_size,), dtype=dtype, minval=-bound, maxval=bound)
    return weight, bias


def prepare_temporal_params(weight, bias):
    """One-time (init-time) conversion:
      * weight (out, in) -> (in, out), cast to bf16 (MXU-native operand),
      * K padded to the kernel K step only when K > 1024,
      * N padded to a lane-dense multiple of 128,
      * bias padded and reshaped to (1, N_pad), kept in f32.
    Returns (wt_p, b_p, n_out)."""
    weight = jnp.asarray(weight)
    bias = jnp.asarray(bias)
    n_out, k_in = weight.shape
    k_pad = k_in if k_in <= _MAX_TK else _round_up(k_in, _K_STEP)
    n_pad = _round_up(n_out, 128)
    wt_p = jnp.pad(weight.T, ((0, k_pad - k_in), (0, n_pad - n_out)))
    wt_p = wt_p.astype(jnp.bfloat16)
    b_p = jnp.pad(bias.astype(jnp.float32), (0, n_pad - n_out)).reshape(1, n_pad)
    return wt_p, b_p, n_out


# ---------------------------------------------------------------------------
# Demo / correctness check
# ---------------------------------------------------------------------------
if __name__ == "__main__":
    key = jax.random.PRNGKey(0)
    k_x, k_p, k_x2, k_p2 = jax.random.split(key, 4)

    # 1) Small shape implied by the module: x (batch, seq, input_size).
    batch, seq, input_size, out_size = 2, 8, 32, 16
    x = jax.random.normal(k_x, (batch, seq, input_size), dtype=jnp.float32)
    weight, bias = init_temporal_params(k_p, input_size, out_size)
    wt_p, b_p, n_out = prepare_temporal_params(weight, bias)

    out = temporal_forward_pallas(x, wt_p, b_p, n_out=n_out)
    jax.block_until_ready(out)
    assert out.shape == (batch, seq, out_size)

    # Matched-precision reference (bf16 operands, f32 accumulation).
    ref_bf16 = jnp.dot(x.astype(jnp.bfloat16), weight.T.astype(jnp.bfloat16),
                       preferred_element_type=jnp.float32) + bias
    assert jnp.allclose(out, ref_bf16, atol=1e-3, rtol=1e-3)
    # Loose check vs the exact f32 nn.Linear reference (bf16 operand rounding).
    ref_f32 = x @ weight.T + bias
    assert jnp.allclose(out, ref_f32, atol=5e-2, rtol=5e-2)

    # 2) Larger shape exercising multi-tile N and K grids:
    #    M=400 (one 400-row tile), K=1536 -> 3 K-steps of 512, N=192 -> padded
    #    to 256 and split into two 128-wide tiles (2 parallel grid tiles).
    b2, s2, in2, out2 = 2, 200, 1536, 192
    x2 = jax.random.normal(k_x2, (b2, s2, in2), dtype=jnp.float32)
    w2, bi2 = init_temporal_params(k_p2, in2, out2)
    wt2, bb2, nout2 = prepare_temporal_params(w2, bi2)

    y2 = temporal_forward_pallas(x2, wt2, bb2, n_out=nout2)
    jax.block_until_ready(y2)
    assert y2.shape == (b2, s2, out2)
    ref2_bf16 = jnp.dot(x2.astype(jnp.bfloat16), w2.T.astype(jnp.bfloat16),
                        preferred_element_type=jnp.float32) + bi2
    assert jnp.allclose(y2, ref2_bf16, atol=1e-3, rtol=1e-3)
    ref2_f32 = x2 @ w2.T + bi2
    assert jnp.allclose(y2, ref2_f32, atol=5e-2, rtol=5e-2)

    print("KERNEL_OK")
</pallas_src>

<mosaic_0001>
module attributes {stable_mosaic.version = 11 : i64} {
  func.func @_linear_kernel(%arg0: i32, %arg1: i32, %arg2: i32, %arg3: memref<16x32xbf16, #tpu.memory_space<vmem>>, %arg4: memref<32x128xbf16, #tpu.memory_space<vmem>>, %arg5: memref<1x128xf32, #tpu.memory_space<vmem>>, %arg6: memref<16x128xf32, #tpu.memory_space<vmem>>) attributes {dimension_semantics = [#tpu.dimension_semantics<parallel>, #tpu.dimension_semantics<parallel>, #tpu.dimension_semantics<arbitrary>], iteration_bounds = array<i64: 1, 1, 1>, scalar_prefetch = 0 : i64, scratch_operands = 0 : i64, tpu.core_type = #tpu.core_type<tc>, window_params = [{transform_indices = @transform_0, window_bounds = array<i64: 16, 32>}, {transform_indices = @transform_1, window_bounds = array<i64: 32, 128>}, {transform_indices = @transform_2, window_bounds = array<i64: 1, 128>}, {transform_indices = @transform_3, window_bounds = array<i64: 16, 128>}]} {
    %c0_i32 = arith.constant 0 : i32
    %0 = arith.cmpi eq, %arg2, %c0_i32 : i32
    %1 = arith.extui %0 : i1 to i32
    %c0_i32_0 = arith.constant 0 : i32
    %2 = arith.cmpi ne, %1, %c0_i32_0 : i32
    scf.if %2 {
      %c0_8 = arith.constant 0 : index
      %c0_9 = arith.constant 0 : index
      %9 = vector.load %arg5[%c0_8, %c0_9] : memref<1x128xf32, #tpu.memory_space<vmem>>, vector<1x128xf32>
      %10 = vector.shape_cast %9 : vector<1x128xf32> to vector<1x128xf32>
      %11 = vector.broadcast %10 : vector<1x128xf32> to vector<16x128xf32>
      %c0_10 = arith.constant 0 : index
      %c0_11 = arith.constant 0 : index
      %12 = vector.load %arg6[%c0_10, %c0_11] : memref<16x128xf32, #tpu.memory_space<vmem>>, vector<16x128xf32>
      tpu.vector_store %arg6[%c0_10, %c0_11], %11 {strides = array<i32>} : memref<16x128xf32, #tpu.memory_space<vmem>>, vector<16x128xf32>,
    } else {
    }
    %c0 = arith.constant 0 : index
    %c0_1 = arith.constant 0 : index
    %3 = vector.load %arg6[%c0, %c0_1] : memref<16x128xf32, #tpu.memory_space<vmem>>, vector<16x128xf32>
    %c0_2 = arith.constant 0 : index
    %c0_3 = arith.constant 0 : index
    %4 = vector.load %arg3[%c0_2, %c0_3] : memref<16x32xbf16, #tpu.memory_space<vmem>>, vector<16x32xbf16>
    %c0_4 = arith.constant 0 : index
    %c0_5 = arith.constant 0 : index
    %5 = vector.load %arg4[%c0_4, %c0_5] : memref<32x128xbf16, #tpu.memory_space<vmem>>, vector<32x128xbf16>
    %cst = arith.constant dense<0.000000e+00> : vector<16x128xf32>
    %6 = tpu.matmul %4, %5, %cst {dimension_numbers = #tpu.dot_dimension_numbers<[1], [0], [0], [1], [0, 0, 1, 1], [], []>} : vector<16x32xbf16>, vector<32x128xbf16>, vector<16x128xf32> -> vector<16x128xf32>
    %7 = arith.addf %3, %6 : vector<16x128xf32>
    %c0_6 = arith.constant 0 : index
    %c0_7 = arith.constant 0 : index
    %8 = vector.load %arg6[%c0_6, %c0_7] : memref<16x128xf32, #tpu.memory_space<vmem>>, vector<16x128xf32>
    tpu.vector_store %arg6[%c0_6, %c0_7], %7 {strides = array<i32>} : memref<16x128xf32, #tpu.memory_space<vmem>>, vector<16x128xf32>,
    return
  }
  func.func @transform_0(%arg0: i32, %arg1: i32, %arg2: i32) -> (i32, i32) {
    %c0_i32 = arith.constant 0 : i32
    return %arg0, %arg2 : i32, i32
  }
  func.func @transform_1(%arg0: i32, %arg1: i32, %arg2: i32) -> (i32, i32) {
    %c0_i32 = arith.constant 0 : i32
    return %arg2, %arg1 : i32, i32
  }
  func.func @transform_2(%arg0: i32, %arg1: i32, %arg2: i32) -> (i32, i32) {
    %c0_i32 = arith.constant 0 : i32
    %c0_i32_0 = arith.constant 0 : i32
    return %c0_i32, %arg1 : i32, i32
  }
  func.func @transform_3(%arg0: i32, %arg1: i32, %arg2: i32) -> (i32, i32) {
    %c0_i32 = arith.constant 0 : i32
    return %arg0, %arg1 : i32, i32
  }
}

</mosaic_0001>

<llo_original>
// kernel: temporal_forward_pallas.1
$region0: #{temporal_forward_pallas.1}
  #allocation0 [shape = 'u32[]', space=smem, size = 0x4, offset = 0x4, fixed_abs, tag = 'smem constant byte address 0x4 - core index']
  #allocation1 [shape = 'u32[144,128]{1,0:T(1,128)}', space=vmem, size = 0x12000, scoped, tag = 'internal scratch']
  %s0 = inlined_call_operand.vmem [shape: bf16[16,32], index: 0, kind: input, shape index: {}]
  %s1 = inlined_call_operand.vmem [shape: bf16[32,128], index: 1, kind: input, shape index: {}]
  %s2 = inlined_call_operand.vmem [shape: f32[1,128], index: 2, kind: input, shape index: {}]
  %s3 = inlined_call_operand.vmem [shape: f32[16,128], index: 3, kind: output, shape index: {}]
  %s4 = sld [smem:[#allocation0]]
  $region26: #{temporal_forward_pallas.1} parent=0
    _
  %s6 = ssub.s32 1, %s4
  %s7 = scalar_select 0, %s6, %s4
  // Predicated region
  $region2: #{temporal_forward_pallas.1} parent=0 // pred_check
    _
  $region3: #{temporal_forward_pallas.1} parent=0 // pred_check_branch
    %9 = sbr.rel (0) target = $region5
  $region4: #{temporal_forward_pallas.1} parent=0 // pred_region
    _
  $region5: #{temporal_forward_pallas.1} parent=0 // pred_fallthru
    _
  // Predicated region
  $region6: #{temporal_forward_pallas.1} parent=0 // pred_check
    _
  $region7: #{temporal_forward_pallas.1} parent=0 // pred_check_branch
    %11 = sbr.rel (0) target = $region9
  $region8: #{temporal_forward_pallas.1} parent=0 // pred_region
    _
  $region9: #{temporal_forward_pallas.1} parent=0 // pred_fallthru
    _
  // Predicated region
  $region10: #{temporal_forward_pallas.1} parent=0 // pred_check
    _
  $region11: #{temporal_forward_pallas.1} parent=0 // pred_check_branch
    %13 = sbr.rel (0) target = $region13
  $region12: #{temporal_forward_pallas.1} parent=0 // pred_region
    _
  $region13: #{temporal_forward_pallas.1} parent=0 // pred_fallthru
    _
  %p15 = scmp.eq.s32.totalorder 0, 0
  // Predicated region
  $region14: #{temporal_forward_pallas.1} parent=0 // pred_check
    %p16 = pneg %p15
  $region15: #{temporal_forward_pallas.1} parent=0 // pred_check_branch
    %18 = sbr.rel (%p16) target = $region17
  $region16: #{temporal_forward_pallas.1} parent=0 // pred_region
    %v19 = vld [vmem:[%s2] sm:$0x1]
    %v21 = vlaneseq
    %v22 = vshrl.u32 %v21, 7
    %v23 = vsub.s32 0, %v22
    %v24 = vrot.slane %v19, %v23
    %26 = vst [vmem:[%s3] sm:$0xff] %v24
    %27 = vst [vmem:[%s3 + $0x8] sm:$0xff] %v24
  $region17: #{temporal_forward_pallas.1} parent=0 // pred_fallthru
    _
  %v28 = vld [vmem:[%s3] sm:$0xff]
  %v29 = vld [vmem:[%s3 + $0x8] sm:$0xff]
  %v30 = vld [vmem:[%s0] sm:$0xf]
  %v31 = vld [vmem:[%s0 + $0x4] sm:$0xf]
  %v32 = vld [vmem:[%s1] sm:$0xf]
  %v33 = vld [vmem:[%s1 + $0x4] sm:$0xf]
  %v34 = vld [vmem:[%s1 + $0x8] sm:$0xf]
  %v35 = vld [vmem:[%s1 + $0xc] sm:$0xf]
  %v38 = vunpack.c.l.b16 %v30
  %v39 = vunpack.c.l.b16 %v31
  %v40 = vpack.c.b16 %v39, %v38
  %v45 = vunpack.c.l.b16 %v32
  %v46 = vunpack.c.l.b16 %v33
  %v47 = vunpack.c.l.b16 %v34
  %v48 = vunpack.c.l.b16 %v35
  %v49 = vpack.c.b16 %v46, %v45
  %v50 = vpack.c.b16 %v48, %v47
  %vm53 = vcmask 261120
  %v55 = vsel %vm53, %v40, 0
  %57 = vmatprep.subr.bf16.mxu0 0
  %58 = vmatpush1.bf16.msra.mxu0 %v49
  %59 = vmatprep.subr.bf16.mxu0 0
  %60 = vmatpush1.bf16.msra.mxu0 %v50
  %61 = vmatprep.subr.bf16.mxu0 0
  %62 = vmatpush1.bf16.msra.mxu0 0
  %63 = vmatprep.subr.bf16.mxu0 0
  %64 = vmatpush1.bf16.msra.mxu0 0
  %65 = vmatprep.subr.bf16.mxu0 0
  %66 = vmatpush1.bf16.msra.mxu0 0
  %67 = vmatprep.subr.bf16.mxu0 0
  %68 = vmatpush1.bf16.msra.mxu0 0
  %69 = vmatprep.subr.bf16.mxu0 0
  %70 = vmatpush1.bf16.msra.mxu0 0
  %71 = vmatprep.subr.bf16.mxu0 0
  %72 = vmatpush1.bf16.msra.mxu0 0
  %73 = vmatprep.subr.bf16.mxu0 0
  %74 = vmatpush1.bf16.msra.mxu0 0
  %75 = vmatprep.subr.bf16.mxu0 0
  %76 = vmatpush1.bf16.msra.mxu0 0
  %77 = vmatprep.subr.bf16.mxu0 0
  %78 = vmatpush1.bf16.msra.mxu0 0
  %79 = vmatprep.subr.bf16.mxu0 0
  %80 = vmatpush1.bf16.msra.mxu0 0
  %81 = vmatprep.subr.bf16.mxu0 0
  %82 = vmatpush1.bf16.msra.mxu0 0
  %83 = vmatprep.subr.bf16.mxu0 0
  %84 = vmatpush1.bf16.msra.mxu0 0
  %85 = vmatprep.subr.bf16.mxu0 0
  %86 = vmatpush1.bf16.msra.mxu0 0
  %87 = vmatprep.subr.bf16.mxu0 0
  %88 = vmatpush1.bf16.msra.mxu0 0
  %89 = vmatprep.mubr.bf16.mxu0 0
  %90 = vmatmul.mubr.bf16.gmra.mrb[0].mxu0 %v55
  %v91 = vpop.f32.mrb[0].mxu0
  %v92 = vadd.f32 0.0, %v91
  %v93 = vpop.f32.mrb[0].mxu0
  %v94 = vpop.f32.mrb[0].mxu0
  %v95 = vadd.f32 0.0, %v94
  %v96 = vpop.f32.mrb[0].mxu0
  %97 = vdwg.mxu0
  %v98 = vadd.f32 %v28, %v92
  %v99 = vadd.f32 %v29, %v95
  %100 = vst [vmem:[%s3] sm:$0xff] %v98
  %101 = vst [vmem:[%s3 + $0x8] sm:$0xff] %v99
  // Predicated region
  $region18: #{temporal_forward_pallas.1} parent=0 // pred_check
    _
  $region19: #{temporal_forward_pallas.1} parent=0 // pred_check_branch
    %103 = sbr.rel (0) target = $region21
  $region20: #{temporal_forward_pallas.1} parent=0 // pred_region
    _
  $region21: #{temporal_forward_pallas.1} parent=0 // pred_fallthru
    _
  // Predicated region
  $region22: #{temporal_forward_pallas.1} parent=0 // pred_check
    _
  $region23: #{temporal_forward_pallas.1} parent=0 // pred_check_branch
    %105 = sbr.rel (0) target = $region25
  $region24: #{temporal_forward_pallas.1} parent=0 // pred_region
    _
  $region25: #{temporal_forward_pallas.1} parent=0 // pred_fallthru
    _

</llo_original>
